<compile_context>
chip_gen: v7x
topology: tpu7x:2x2x1
jax: 0.10.0
libtpu: 0.0.40
codegen_flags: <defaults>
</compile_context>

<pallas_src>
import math

import jax
import jax.numpy as jnp
from jax.experimental import pallas as pl
from jax.experimental.pallas import tpu as pltpu

_LANE = 128


def _jaccard_partials_kernel(pred_ref, targ_ref,
                             out_i_ref, out_p_ref, out_t_ref,
                             inter_acc, p2_acc, t2_acc):
    k = pl.program_id(1)

    @pl.when(k == 0)
    def _():
        inter_acc[...] = jnp.zeros_like(inter_acc)
        p2_acc[...] = jnp.zeros_like(p2_acc)
        t2_acc[...] = jnp.zeros_like(t2_acc)

    p = pred_ref[...].astype(jnp.float32)
    t = targ_ref[...].astype(jnp.float32)

    # Pure-VPU elementwise accumulation on the inner loop; no per-tile XLU reduce.
    inter_acc[...] += p * t
    p2_acc[...] += p * p
    t2_acc[...] += t * t

    @pl.when(k == pl.num_programs(1) - 1)
    def _():
        # Reduce the sublane (row) axis once per split; keep the 128-lane axis so
        # the output stores are lane-dense (unmasked).  Final lane reduce is in JAX.
        out_i_ref[...] = jnp.sum(inter_acc[...], axis=1)[None]
        out_p_ref[...] = jnp.sum(p2_acc[...], axis=1)[None]
        out_t_ref[...] = jnp.sum(t2_acc[...], axis=1)[None]


def jaccard_loss(pred, target, *, target_block_bytes=2 << 20, num_splits=2,
                 vmem_limit_bytes=40 << 20):
    """pred: (N, 1, D, H, W), target: (N, D, H, W) -> scalar f32 loss."""
    pred = jnp.squeeze(pred, axis=1)                     # (N, D, H, W)
    n = pred.shape[0]
    l = math.prod(pred.shape[1:])
    pred2d = pred.reshape(n, l)
    targ2d = target.reshape(n, l)

    # Tile rows of 128 lanes: multiple of 8, sized for ~target_block_bytes per
    # input block (f32 sizing), but no larger than what one split actually needs.
    rows_needed = -(-l // _LANE)
    rows_cap = max(8, (target_block_bytes // (n * _LANE * 4)) // 8 * 8)
    rows_per_split = ((-(-rows_needed // num_splits) + 7) // 8) * 8
    tile_rows = max(8, min(rows_cap, rows_per_split))

    # Pad L with zeros (sum-neutral for all three accumulators) so it divides
    # evenly into num_splits * tile_rows * 128 chunks -> streaming pipeline kept.
    chunk = num_splits * tile_rows * _LANE
    l_pad = ((l + chunk - 1) // chunk) * chunk
    if l_pad != l:
        pad = l_pad - l
        pred2d = jnp.pad(pred2d, ((0, 0), (0, pad)))
        targ2d = jnp.pad(targ2d, ((0, 0), (0, pad)))

    rows_total = l_pad // _LANE
    pred3d = pred2d.reshape(n, rows_total, _LANE)
    targ3d = targ2d.reshape(n, rows_total, _LANE)
    tiles_per_split = rows_total // (num_splits * tile_rows)

    in_map = lambda s, k: (0, s * tiles_per_split + k, 0)
    out_map = lambda s, k: (s, 0, 0)
    part_shape = jax.ShapeDtypeStruct((num_splits, n, _LANE), jnp.float32)

    out_i, out_p, out_t = pl.pallas_call(
        _jaccard_partials_kernel,
        out_shape=(part_shape, part_shape, part_shape),
        grid_spec=pltpu.PrefetchScalarGridSpec(
            num_scalar_prefetch=0,
            grid=(num_splits, tiles_per_split),
            in_specs=[
                pl.BlockSpec((n, tile_rows, _LANE), in_map),
                pl.BlockSpec((n, tile_rows, _LANE), in_map),
            ],
            out_specs=[
                pl.BlockSpec((1, n, _LANE), out_map),
                pl.BlockSpec((1, n, _LANE), out_map),
                pl.BlockSpec((1, n, _LANE), out_map),
            ],
            scratch_shapes=[
                pltpu.VMEM((n, tile_rows, _LANE), jnp.float32),
                pltpu.VMEM((n, tile_rows, _LANE), jnp.float32),
                pltpu.VMEM((n, tile_rows, _LANE), jnp.float32),
            ],
        ),
        compiler_params=pltpu.CompilerParams(
            dimension_semantics=("parallel", "arbitrary"),
            vmem_limit_bytes=vmem_limit_bytes,
        ),
    )(pred3d, targ3d)

    # Finalize (tiny O(N) work) in plain JAX: combine per-split, per-lane
    # partial sums, then dice / mean / clamp — matches the PyTorch forward.
    inter = out_i.sum(axis=(0, 2))
    p2 = out_p.sum(axis=(0, 2))
    t2 = out_t.sum(axis=(0, 2))
    smooth = 1.0
    dice = inter / (p2 + t2 - inter + smooth)
    return jnp.clip(jnp.mean(1.0 - dice), 0.0, 1.0)


def jaccard_loss_ref(pred, target):
    """Pure-JAX reference mirroring the PyTorch forward exactly."""
    p = jnp.squeeze(pred, axis=1)
    smooth = 1.0
    inter = (p * target).sum(axis=1).sum(axis=1).sum(axis=1)
    denom = (p ** 2).sum(axis=1).sum(axis=1).sum(axis=1) \
        + (target ** 2).sum(axis=1).sum(axis=1).sum(axis=1) - inter + smooth
    dice = inter / denom
    return jnp.clip(jnp.mean(1.0 - dice), 0.0, 1.0)


if __name__ == "__main__":
    key = jax.random.PRNGKey(0)
    k1, k2 = jax.random.split(key)
    # pred: (N, 1, D, H, W), target: (N, D, H, W)
    N, D, H, W = 2, 4, 16, 16
    pred = jax.random.uniform(k1, (N, 1, D, H, W), dtype=jnp.float32)
    target = (jax.random.uniform(k2, (N, D, H, W)) > 0.5).astype(jnp.float32)

    loss = jax.jit(jaccard_loss)(pred, target)
    loss = jax.block_until_ready(loss)

    ref = jaccard_loss_ref(pred, target)
    assert jnp.allclose(loss, ref, atol=1e-5, rtol=1e-5), (loss, ref)
    print("KERNEL_OK")
</pallas_src>

<mosaic_0001>
module attributes {stable_mosaic.version = 11 : i64} {
  func.func @_jaccard_partials_kernel(%arg0: i32, %arg1: i32, %arg2: memref<2x8x128xf32, #tpu.memory_space<vmem>>, %arg3: memref<2x8x128xf32, #tpu.memory_space<vmem>>, %arg4: memref<1x2x128xf32, #tpu.memory_space<vmem>>, %arg5: memref<1x2x128xf32, #tpu.memory_space<vmem>>, %arg6: memref<1x2x128xf32, #tpu.memory_space<vmem>>, %arg7: memref<2x8x128xf32, #tpu.memory_space<vmem>>, %arg8: memref<2x8x128xf32, #tpu.memory_space<vmem>>, %arg9: memref<2x8x128xf32, #tpu.memory_space<vmem>>) attributes {dimension_semantics = [#tpu.dimension_semantics<parallel>, #tpu.dimension_semantics<arbitrary>], iteration_bounds = array<i64: 2, 1>, scalar_prefetch = 0 : i64, scratch_operands = 3 : i64, tpu.core_type = #tpu.core_type<tc>, window_params = [{transform_indices = @transform_0, window_bounds = array<i64: 2, 8, 128>}, {transform_indices = @transform_1, window_bounds = array<i64: 2, 8, 128>}, {transform_indices = @transform_2, window_bounds = array<i64: 1, 2, 128>}, {transform_indices = @transform_3, window_bounds = array<i64: 1, 2, 128>}, {transform_indices = @transform_4, window_bounds = array<i64: 1, 2, 128>}]} {
    %c0_i32 = arith.constant 0 : i32
    %0 = arith.cmpi eq, %arg1, %c0_i32 : i32
    %1 = arith.extui %0 : i1 to i32
    %c0_i32_0 = arith.constant 0 : i32
    %2 = arith.cmpi ne, %1, %c0_i32_0 : i32
    scf.if %2 {
      %cst = arith.constant 0.000000e+00 : f32
      %20 = vector.broadcast %cst : f32 to vector<2x8x128xf32>
      %c0_26 = arith.constant 0 : index
      %c0_27 = arith.constant 0 : index
      %c0_28 = arith.constant 0 : index
      %21 = vector.load %arg7[%c0_26, %c0_27, %c0_28] : memref<2x8x128xf32, #tpu.memory_space<vmem>>, vector<2x8x128xf32>
      tpu.vector_store %arg7[%c0_26, %c0_27, %c0_28], %20 {strides = array<i32>} : memref<2x8x128xf32, #tpu.memory_space<vmem>>, vector<2x8x128xf32>,
      %cst_29 = arith.constant 0.000000e+00 : f32
      %22 = vector.broadcast %cst_29 : f32 to vector<2x8x128xf32>
      %c0_30 = arith.constant 0 : index
      %c0_31 = arith.constant 0 : index
      %c0_32 = arith.constant 0 : index
      %23 = vector.load %arg8[%c0_30, %c0_31, %c0_32] : memref<2x8x128xf32, #tpu.memory_space<vmem>>, vector<2x8x128xf32>
      tpu.vector_store %arg8[%c0_30, %c0_31, %c0_32], %22 {strides = array<i32>} : memref<2x8x128xf32, #tpu.memory_space<vmem>>, vector<2x8x128xf32>,
      %cst_33 = arith.constant 0.000000e+00 : f32
      %24 = vector.broadcast %cst_33 : f32 to vector<2x8x128xf32>
      %c0_34 = arith.constant 0 : index
      %c0_35 = arith.constant 0 : index
      %c0_36 = arith.constant 0 : index
      %25 = vector.load %arg9[%c0_34, %c0_35, %c0_36] : memref<2x8x128xf32, #tpu.memory_space<vmem>>, vector<2x8x128xf32>
      tpu.vector_store %arg9[%c0_34, %c0_35, %c0_36], %24 {strides = array<i32>} : memref<2x8x128xf32, #tpu.memory_space<vmem>>, vector<2x8x128xf32>,
    } else {
    }
    %c0 = arith.constant 0 : index
    %c0_1 = arith.constant 0 : index
    %c0_2 = arith.constant 0 : index
    %3 = vector.load %arg2[%c0, %c0_1, %c0_2] : memref<2x8x128xf32, #tpu.memory_space<vmem>>, vector<2x8x128xf32>
    %c0_3 = arith.constant 0 : index
    %c0_4 = arith.constant 0 : index
    %c0_5 = arith.constant 0 : index
    %4 = vector.load %arg3[%c0_3, %c0_4, %c0_5] : memref<2x8x128xf32, #tpu.memory_space<vmem>>, vector<2x8x128xf32>
    %c0_6 = arith.constant 0 : index
    %c0_7 = arith.constant 0 : index
    %c0_8 = arith.constant 0 : index
    %5 = vector.load %arg7[%c0_6, %c0_7, %c0_8] : memref<2x8x128xf32, #tpu.memory_space<vmem>>, vector<2x8x128xf32>
    %6 = arith.mulf %3, %4 : vector<2x8x128xf32>
    %7 = arith.addf %5, %6 : vector<2x8x128xf32>
    %c0_9 = arith.constant 0 : index
    %c0_10 = arith.constant 0 : index
    %c0_11 = arith.constant 0 : index
    %8 = vector.load %arg7[%c0_9, %c0_10, %c0_11] : memref<2x8x128xf32, #tpu.memory_space<vmem>>, vector<2x8x128xf32>
    tpu.vector_store %arg7[%c0_9, %c0_10, %c0_11], %7 {strides = array<i32>} : memref<2x8x128xf32, #tpu.memory_space<vmem>>, vector<2x8x128xf32>,
    %c0_12 = arith.constant 0 : index
    %c0_13 = arith.constant 0 : index
    %c0_14 = arith.constant 0 : index
    %9 = vector.load %arg8[%c0_12, %c0_13, %c0_14] : memref<2x8x128xf32, #tpu.memory_space<vmem>>, vector<2x8x128xf32>
    %10 = arith.mulf %3, %3 : vector<2x8x128xf32>
    %11 = arith.addf %9, %10 : vector<2x8x128xf32>
    %c0_15 = arith.constant 0 : index
    %c0_16 = arith.constant 0 : index
    %c0_17 = arith.constant 0 : index
    %12 = vector.load %arg8[%c0_15, %c0_16, %c0_17] : memref<2x8x128xf32, #tpu.memory_space<vmem>>, vector<2x8x128xf32>
    tpu.vector_store %arg8[%c0_15, %c0_16, %c0_17], %11 {strides = array<i32>} : memref<2x8x128xf32, #tpu.memory_space<vmem>>, vector<2x8x128xf32>,
    %c0_18 = arith.constant 0 : index
    %c0_19 = arith.constant 0 : index
    %c0_20 = arith.constant 0 : index
    %13 = vector.load %arg9[%c0_18, %c0_19, %c0_20] : memref<2x8x128xf32, #tpu.memory_space<vmem>>, vector<2x8x128xf32>
    %14 = arith.mulf %4, %4 : vector<2x8x128xf32>
    %15 = arith.addf %13, %14 : vector<2x8x128xf32>
    %c0_21 = arith.constant 0 : index
    %c0_22 = arith.constant 0 : index
    %c0_23 = arith.constant 0 : index
    %16 = vector.load %arg9[%c0_21, %c0_22, %c0_23] : memref<2x8x128xf32, #tpu.memory_space<vmem>>, vector<2x8x128xf32>
    tpu.vector_store %arg9[%c0_21, %c0_22, %c0_23], %15 {strides = array<i32>} : memref<2x8x128xf32, #tpu.memory_space<vmem>>, vector<2x8x128xf32>,
    %c0_i32_24 = arith.constant 0 : i32
    %17 = arith.cmpi eq, %arg1, %c0_i32_24 : i32
    %18 = arith.extui %17 : i1 to i32
    %c0_i32_25 = arith.constant 0 : i32
    %19 = arith.cmpi ne, %18, %c0_i32_25 : i32
    scf.if %19 {
      %c0_26 = arith.constant 0 : index
      %c0_27 = arith.constant 0 : index
      %c0_28 = arith.constant 0 : index
      %20 = vector.load %arg7[%c0_26, %c0_27, %c0_28] : memref<2x8x128xf32, #tpu.memory_space<vmem>>, vector<2x8x128xf32>
      %cst = arith.constant dense<0.000000e+00> : vector<2x128xf32>
      %21 = vector.multi_reduction <add>, %20, %cst [1] : vector<2x8x128xf32> to vector<2x128xf32>
      %22 = vector.shape_cast %21 : vector<2x128xf32> to vector<1x2x128xf32>
      %c0_29 = arith.constant 0 : index
      %c0_30 = arith.constant 0 : index
      %c0_31 = arith.constant 0 : index
      %23 = vector.load %arg4[%c0_29, %c0_30, %c0_31] : memref<1x2x128xf32, #tpu.memory_space<vmem>>, vector<1x2x128xf32>
      tpu.vector_store %arg4[%c0_29, %c0_30, %c0_31], %22 {strides = array<i32>} : memref<1x2x128xf32, #tpu.memory_space<vmem>>, vector<1x2x128xf32>,
      %c0_32 = arith.constant 0 : index
      %c0_33 = arith.constant 0 : index
      %c0_34 = arith.constant 0 : index
      %24 = vector.load %arg8[%c0_32, %c0_33, %c0_34] : memref<2x8x128xf32, #tpu.memory_space<vmem>>, vector<2x8x128xf32>
      %cst_35 = arith.constant dense<0.000000e+00> : vector<2x128xf32>
      %25 = vector.multi_reduction <add>, %24, %cst_35 [1] : vector<2x8x128xf32> to vector<2x128xf32>
      %26 = vector.shape_cast %25 : vector<2x128xf32> to vector<1x2x128xf32>
      %c0_36 = arith.constant 0 : index
      %c0_37 = arith.constant 0 : index
      %c0_38 = arith.constant 0 : index
      %27 = vector.load %arg5[%c0_36, %c0_37, %c0_38] : memref<1x2x128xf32, #tpu.memory_space<vmem>>, vector<1x2x128xf32>
      tpu.vector_store %arg5[%c0_36, %c0_37, %c0_38], %26 {strides = array<i32>} : memref<1x2x128xf32, #tpu.memory_space<vmem>>, vector<1x2x128xf32>,
      %c0_39 = arith.constant 0 : index
      %c0_40 = arith.constant 0 : index
      %c0_41 = arith.constant 0 : index
      %28 = vector.load %arg9[%c0_39, %c0_40, %c0_41] : memref<2x8x128xf32, #tpu.memory_space<vmem>>, vector<2x8x128xf32>
      %cst_42 = arith.constant dense<0.000000e+00> : vector<2x128xf32>
      %29 = vector.multi_reduction <add>, %28, %cst_42 [1] : vector<2x8x128xf32> to vector<2x128xf32>
      %30 = vector.shape_cast %29 : vector<2x128xf32> to vector<1x2x128xf32>
      %c0_43 = arith.constant 0 : index
      %c0_44 = arith.constant 0 : index
      %c0_45 = arith.constant 0 : index
      %31 = vector.load %arg6[%c0_43, %c0_44, %c0_45] : memref<1x2x128xf32, #tpu.memory_space<vmem>>, vector<1x2x128xf32>
      tpu.vector_store %arg6[%c0_43, %c0_44, %c0_45], %30 {strides = array<i32>} : memref<1x2x128xf32, #tpu.memory_space<vmem>>, vector<1x2x128xf32>,
    } else {
    }
    return
  }
  func.func @transform_0(%arg0: i32, %arg1: i32) -> (i32, i32, i32) {
    %c1_i32 = arith.constant 1 : i32
    %0 = arith.muli %arg0, %c1_i32 : i32
    %1 = arith.addi %0, %arg1 : i32
    %c0_i32 = arith.constant 0 : i32
    %c0_i32_0 = arith.constant 0 : i32
    %c0_i32_1 = arith.constant 0 : i32
    return %c0_i32, %1, %c0_i32_0 : i32, i32, i32
  }
  func.func @transform_1(%arg0: i32, %arg1: i32) -> (i32, i32, i32) {
    %c1_i32 = arith.constant 1 : i32
    %0 = arith.muli %arg0, %c1_i32 : i32
    %1 = arith.addi %0, %arg1 : i32
    %c0_i32 = arith.constant 0 : i32
    %c0_i32_0 = arith.constant 0 : i32
    %c0_i32_1 = arith.constant 0 : i32
    return %c0_i32, %1, %c0_i32_0 : i32, i32, i32
  }
  func.func @transform_2(%arg0: i32, %arg1: i32) -> (i32, i32, i32) {
    %c0_i32 = arith.constant 0 : i32
    %c0_i32_0 = arith.constant 0 : i32
    %c0_i32_1 = arith.constant 0 : i32
    return %arg0, %c0_i32, %c0_i32_0 : i32, i32, i32
  }
  func.func @transform_3(%arg0: i32, %arg1: i32) -> (i32, i32, i32) {
    %c0_i32 = arith.constant 0 : i32
    %c0_i32_0 = arith.constant 0 : i32
    %c0_i32_1 = arith.constant 0 : i32
    return %arg0, %c0_i32, %c0_i32_0 : i32, i32, i32
  }
  func.func @transform_4(%arg0: i32, %arg1: i32) -> (i32, i32, i32) {
    %c0_i32 = arith.constant 0 : i32
    %c0_i32_0 = arith.constant 0 : i32
    %c0_i32_1 = arith.constant 0 : i32
    return %arg0, %c0_i32, %c0_i32_0 : i32, i32, i32
  }
}

</mosaic_0001>

<llo_original>
// kernel: squeeze.1
$region0: #{squeeze.1}
  %s0 = inlined_call_operand.hbm [shape: f32[2,1,4,16,16], index: 0, kind: input, shape index: {}]
  %s1 = inlined_call_operand.vmem [shape: f32[2,1024], index: 1, kind: output, shape index: {}]
  $region1: #{squeeze.1} parent=0
    #allocation0 [shape = 'u8[65536]{0}', space=vmem, size = 0x10000, scoped, tag = 'operand span for operand 0']
    #allocation1 [shape = 's32[1]{0}', space=sflag, size = 0x4, scoped, tag = 'scoped memory for squeeze.1']
    #allocation2 [shape = 'u8[32768]{0}', space=vmem, size = 0x8000, scoped, tag = 'scoped mem for output reshape']
    %2 = vsyncpa [#allocation1], 0
    %s4 = ssub.s32 2048, 2048
    %5 = vsyncadd [#allocation1], %s4
    %s7 = sshll.u32 [#allocation0], 4
    %s8 = int_to_ptr.vmem [resolvable:$true] %s7
    %10 = dma.hbm_to_vmem [thread:$0]  %s0, 2048, %s8, [#allocation1]
    %11 = dma.done [#allocation1], 2048
    %v12 = vld [vmem:[#allocation0] ss:$8 sm:$0xf]
    %v13 = vld [vmem:[#allocation0] ss:$8 sm:$0xf0]
    %vm14 = vcmask 1047556
    %v15 = vsel %vm14, %v13, %v12
    %vm16 = vcmask 130048
    %17 = vst.msk [vmem:[#allocation2] ss:$8 sm:$0xf] %vm16, %v15
    %18 = vst.msk [vmem:[#allocation2] ss:$8 sm:$0xf0] %vm16, %v15
    %s19 = scalar_lea.vmem [#allocation0], 64
    %v20 = vld [vmem:[%s19] ss:$8 sm:$0xf]
    %s21 = scalar_lea.vmem [#allocation0], 64
    %v22 = vld [vmem:[%s21] ss:$8 sm:$0xf0]
    %vm23 = vcmask 1047556
    %v24 = vsel %vm23, %v22, %v20
    %vm25 = vcmask 130048
    %s26 = scalar_lea.vmem [#allocation2], 1
    %27 = vst.msk [vmem:[%s26] ss:$8 sm:$0xf] %vm25, %v24
    %s28 = scalar_lea.vmem [#allocation2], 1
    %29 = vst.msk [vmem:[%s28] ss:$8 sm:$0xf0] %vm25, %v24
    %s30 = scalar_lea.vmem [#allocation0], 7
    %v31 = vld [vmem:[%s30] sm:$0x1]
    %s32 = scalar_lea.vmem [#allocation0], 127
    %s33 = smov 6
    %v34 = vld [vmem:[%s32] ss:$-56 sm:%s33]
    %vm35 = vcmask 1042433
    %v36 = vsel %vm35, %v34, %v31
    %s37 = scalar_lea.vmem [#allocation0], 247
    %s38 = smov 24
    %v39 = vld [vmem:[%s37] ss:$-56 sm:%s38]
    %vm40 = vcmask 1044483
    %v41 = vsel %vm40, %v39, %v36
    %s42 = scalar_lea.vmem [#allocation0], 367
    %s43 = smov 96
    %v44 = vld [vmem:[%s42] ss:$-56 sm:%s43]
    %vm45 = vcmask 1046533
    %v46 = vsel %vm45, %v44, %v41
    %s47 = scalar_lea.vmem [#allocation0], 88
    %v48 = vld [vmem:[%s47] sm:$0x80]
    %vm49 = vcmask 1047559
    %v50 = vsel %vm49, %v48, %v46
    %51 = vrot.lane.b32.xlu0 %v50, 112
    %v52 = vpop.permute.xlu0 %51
    %vm53 = vcmask 1048448
    %54 = vst.msk [vmem:[#allocation2] sm:$0x3] %vm53, %v52
    %s55 = scalar_lea.vmem [#allocation2], 6
    %56 = vst.msk [vmem:[%s55] sm:$0xc] %vm53, %v52
    %s57 = scalar_lea.vmem [#allocation2], 12
    %58 = vst.msk [vmem:[%s57] sm:$0x30] %vm53, %v52
    %s59 = scalar_lea.vmem [#allocation2], 18
    %60 = vst.msk [vmem:[%s59] sm:$0xc0] %vm53, %v52
    %s61 = scalar_lea.vmem [#allocation0], 39
    %v62 = vld [vmem:[%s61] sm:$0x1]
    %s63 = scalar_lea.vmem [#allocation0], 159
    %s64 = smov 6
    %v65 = vld [vmem:[%s63] ss:$-56 sm:%s64]
    %vm66 = vcmask 1042433
    %v67 = vsel %vm66, %v65, %v62
    %s68 = scalar_lea.vmem [#allocation0], 279
    %s69 = smov 24
    %v70 = vld [vmem:[%s68] ss:$-56 sm:%s69]
    %vm71 = vcmask 1044483
    %v72 = vsel %vm71, %v70, %v67
    %s73 = scalar_lea.vmem [#allocation0], 399
    %s74 = smov 96
    %v75 = vld [vmem:[%s73] ss:$-56 sm:%s74]
    %vm76 = vcmask 1046533
    %v77 = vsel %vm76, %v75, %v72
    %s78 = scalar_lea.vmem [#allocation0], 120
    %v79 = vld [vmem:[%s78] sm:$0x80]
    %vm80 = vcmask 1047559
    %v81 = vsel %vm80, %v79, %v77
    %82 = vrot.lane.b32.xlu0 %v81, 112
    %v83 = vpop.permute.xlu0 %82
    %vm84 = vcmask 1048448
    %s85 = scalar_lea.vmem [#allocation2], 32
    %86 = vst.msk [vmem:[%s85] sm:$0x3] %vm84, %v83
    %s87 = scalar_lea.vmem [#allocation2], 38
    %88 = vst.msk [vmem:[%s87] sm:$0xc] %vm84, %v83
    %s89 = scalar_lea.vmem [#allocation2], 44
    %90 = vst.msk [vmem:[%s89] sm:$0x30] %vm84, %v83
    %s91 = scalar_lea.vmem [#allocation2], 50
    %92 = vst.msk [vmem:[%s91] sm:$0xc0] %vm84, %v83
    %s93 = scalar_lea.vmem [#allocation0], 6
    %v94 = vld [vmem:[%s93] sm:$0x1]
    %s95 = scalar_lea.vmem [#allocation0], 126
    %s96 = smov 6
    %v97 = vld [vmem:[%s95] ss:$-56 sm:%s96]
    %vm98 = vcmask 1042433
    %v99 = vsel %vm98, %v97, %v94
    %s100 = scalar_lea.vmem [#allocation0], 246
    %s101 = smov 24
    %v102 = vld [vmem:[%s100] ss:$-56 sm:%s101]
    %vm103 = vcmask 1044483
    %v104 = vsel %vm103, %v102, %v99
    %s105 = scalar_lea.vmem [#allocation0], 366
    %s106 = smov 96
    %v107 = vld [vmem:[%s105] ss:$-56 sm:%s106]
    %vm108 = vcmask 1046533
    %v109 = vsel %vm108, %v107, %v104
    %s110 = scalar_lea.vmem [#allocation0], 87
    %v111 = vld [vmem:[%s110] sm:$0x80]
    %vm112 = vcmask 1047559
    %v113 = vsel %vm112, %v111, %v109
    %114 = vrot.lane.b32.xlu0 %v113, 96
    %v115 = vpop.permute.xlu0 %114
    %vm116 = vcmask 917248
    %117 = vst.msk [vmem:[#allocation2] sm:$0x3] %vm116, %v115
    %s118 = scalar_lea.vmem [#allocation2], 6
    %119 = vst.msk [vmem:[%s118] sm:$0xc] %vm116, %v115
    %s120 = scalar_lea.vmem [#allocation2], 12
    %121 = vst.msk [vmem:[%s120] sm:$0x30] %vm116, %v115
    %s122 = scalar_lea.vmem [#allocation2], 18
    %123 = vst.msk [vmem:[%s122] sm:$0xc0] %vm116, %v115
    %s124 = scalar_lea.vmem [#allocation0], 38
    %v125 = vld [vmem:[%s124] sm:$0x1]
    %s126 = scalar_lea.vmem [#allocation0], 158
    %s127 = smov 6
    %v128 = vld [vmem:[%s126] ss:$-56 sm:%s127]
    %vm129 = vcmask 1042433
    %v130 = vsel %vm129, %v128, %v125
    %s131 = scalar_lea.vmem [#allocation0], 278
    %s132 = smov 24
    %v133 = vld [vmem:[%s131] ss:$-56 sm:%s132]
    %vm134 = vcmask 1044483
    %v135 = vsel %vm134, %v133, %v130
    %s136 = scalar_lea.vmem [#allocation0], 398
    %s137 = smov 96
    %v138 = vld [vmem:[%s136] ss:$-56 sm:%s137]
    %vm139 = vcmask 1046533
    %v140 = vsel %vm139, %v138, %v135
    %s141 = scalar_lea.vmem [#allocation0], 119
    %v142 = vld [vmem:[%s141] sm:$0x80]
    %vm143 = vcmask 1047559
    %v144 = vsel %vm143, %v142, %v140
    %145 = vrot.lane.b32.xlu0 %v144, 96
    %v146 = vpop.permute.xlu0 %145
    %vm147 = vcmask 917248
    %s148 = scalar_lea.vmem [#allocation2], 32
    %149 = vst.msk [vmem:[%s148] sm:$0x3] %vm147, %v146
    %s150 = scalar_lea.vmem [#allocation2], 38
    %151 = vst.msk [vmem:[%s150] sm:$0xc] %vm147, %v146
    %s152 = scalar_lea.vmem [#allocation2], 44
    %153 = vst.msk [vmem:[%s152] sm:$0x30] %vm147, %v146
    %s154 = scalar_lea.vmem [#allocation2], 50
    %155 = vst.msk [vmem:[%s154] sm:$0xc0] %vm147, %v146
    %s156 = scalar_lea.vmem [#allocation0], 5
    %v157 = vld [vmem:[%s156] sm:$0x1]
    %s158 = scalar_lea.vmem [#allocation0], 125
    %s159 = smov 6
    %v160 = vld [vmem:[%s158] ss:$-56 sm:%s159]
    %vm161 = vcmask 1042433
    %v162 = vsel %vm161, %v160, %v157
    %s163 = scalar_lea.vmem [#allocation0], 245
    %s164 = smov 24
    %v165 = vld [vmem:[%s163] ss:$-56 sm:%s164]
    %vm166 = vcmask 1044483
    %v167 = vsel %vm166, %v165, %v162
    %s168 = scalar_lea.vmem [#allocation0], 365
    %s169 = smov 96
    %v170 = vld [vmem:[%s168] ss:$-56 sm:%s169]
    %vm171 = vcmask 1046533
    %v172 = vsel %vm171, %v170, %v167
    %s173 = scalar_lea.vmem [#allocation0], 86
    %v174 = vld [vmem:[%s173] sm:$0x80]
    %vm175 = vcmask 1047559
    %v176 = vsel %vm175, %v174, %v172
    %177 = vrot.lane.b32.xlu0 %v176, 80
    %v178 = vpop.permute.xlu0 %177
    %vm179 = vcmask 786048
    %180 = vst.msk [vmem:[#allocation2] sm:$0x3] %vm179, %v178
    %s181 = scalar_lea.vmem [#allocation2], 6
    %182 = vst.msk [vmem:[%s181] sm:$0xc] %vm179, %v178
    %s183 = scalar_lea.vmem [#allocation2], 12
    %184 = vst.msk [vmem:[%s183] sm:$0x30] %vm179, %v178
    %s185 = scalar_lea.vmem [#allocation2], 18
    %186 = vst.msk [vmem:[%s185] sm:$0xc0] %vm179, %v178
    %s187 = scalar_lea.vmem [#allocation0], 37
    %v188 = vld [vmem:[%s187] sm:$0x1]
    %s189 = scalar_lea.vmem [#allocation0], 157
    %s190 = smov 6
    %v191 = vld [vmem:[%s189] ss:$-56 sm:%s190]
    %vm192 = vcmask 1042433
    %v193 = vsel %vm192, %v191, %v188
    %s194 = scalar_lea.vmem [#allocation0], 277
    %s195 = smov 24
    %v196 = vld [vmem:[%s194] ss:$-56 sm:%s195]
    %vm197 = vcmask 1044483
    %v198 = vsel %vm197, %v196, %v193
    %s199 = scalar_lea.vmem [#allocation0], 397
    %s200 = smov 96
    %v201 = vld [vmem:[%s199] ss:$-56 sm:%s200]
    %vm202 = vcmask 1046533
    %v203 = vsel %vm202, %v201, %v198
    %s204 = scalar_lea.vmem [#allocation0], 118
    %v205 = vld [vmem:[%s204] sm:$0x80]
    %vm206 = vcmask 1047559
    %v207 = vsel %vm206, %v205, %v203
    %208 = vrot.lane.b32.xlu0 %v207, 80
    %v209 = vpop.permute.xlu0 %208
    %vm210 = vcmask 786048
    %s211 = scalar_lea.vmem [#allocation2], 32
    %212 = vst.msk [vmem:[%s211] sm:$0x3] %vm210, %v209
    %s213 = scalar_lea.vmem [#allocation2], 38
    %214 = vst.msk [vmem:[%s213] sm:$0xc] %vm210, %v209
    %s215 = scalar_lea.vmem [#allocation2], 44
    %216 = vst.msk [vmem:[%s215] sm:$0x30] %vm210, %v209
    %s217 = scalar_lea.vmem [#allocation2], 50
    %218 = vst.msk [vmem:[%s217] sm:$0xc0] %vm210, %v209
    %s219 = scalar_lea.vmem [#allocation0], 4
    %v220 = vld [vmem:[%s219] sm:$0x1]
    %s221 = scalar_lea.vmem [#allocation0], 124
    %s222 = smov 6
    %v223 = vld [vmem:[%s221] ss:$-56 sm:%s222]
    %vm224 = vcmask 1042433
    %v225 = vsel %vm224, %v223, %v220
    %s226 = scalar_lea.vmem [#allocation0], 244
    %s227 = smov 24
    %v228 = vld [vmem:[%s226] ss:$-56 sm:%s227]
    %vm229 = vcmask 1044483
    %v230 = vsel %vm229, %v228, %v225
    %s231 = scalar_lea.vmem [#allocation0], 364
    %s232 = smov 96
    %v233 = vld [vmem:[%s231] ss:$-56 sm:%s232]
    %vm234 = vcmask 1046533
    %v235 = vsel %vm234, %v233, %v230
    %s236 = scalar_lea.vmem [#allocation0], 85
    %v237 = vld [vmem:[%s236] sm:$0x80]
    %vm238 = vcmask 1047559
    %v239 = vsel %vm238, %v237, %v235
    %240 = vrot.lane.b32.xlu0 %v239, 64
    %v241 = vpop.permute.xlu0 %240
    %vm242 = vcmask 654848
    %243 = vst.msk [vmem:[#allocation2] sm:$0x3] %vm242, %v241
    %s244 = scalar_lea.vmem [#allocation2], 6
    %245 = vst.msk [vmem:[%s244] sm:$0xc] %vm242, %v241
    %s246 = scalar_lea.vmem [#allocation2], 12
    %247 = vst.msk [vmem:[%s246] sm:$0x30] %vm242, %v241
    %s248 = scalar_lea.vmem [#allocation2], 18
    %249 = vst.msk [vmem:[%s248] sm:$0xc0] %vm242, %v241
    %s250 = scalar_lea.vmem [#allocation0], 36
    %v251 = vld [vmem:[%s250] sm:$0x1]
    %s252 = scalar_lea.vmem [#allocation0], 156
    %s253 = smov 6
    %v254 = vld [vmem:[%s252] ss:$-56 sm:%s253]
    %vm255 = vcmask 1042433
    %v256 = vsel %vm255, %v254, %v251
    %s257 = scalar_lea.vmem [#allocation0], 276
    %s258 = smov 24
    %v259 = vld [vmem:[%s257] ss:$-56 sm:%s258]
    %vm260 = vcmask 1044483
    %v261 = vsel %vm260, %v259, %v256
    %s262 = scalar_lea.vmem [#allocation0], 396
    %s263 = smov 96
    %v264 = vld [vmem:[%s262] ss:$-56 sm:%s263]
    %vm265 = vcmask 1046533
    %v266 = vsel %vm265, %v264, %v261
    %s267 = scalar_lea.vmem [#allocation0], 117
    %v268 = vld [vmem:[%s267] sm:$0x80]
    %vm269 = vcmask 1047559
    %v270 = vsel %vm269, %v268, %v266
    %271 = vrot.lane.b32.xlu0 %v270, 64
    %v272 = vpop.permute.xlu0 %271
    %vm273 = vcmask 654848
    %s274 = scalar_lea.vmem [#allocation2], 32
    %275 = vst.msk [vmem:[%s274] sm:$0x3] %vm273, %v272
    %s276 = scalar_lea.vmem [#allocation2], 38
    %277 = vst.msk [vmem:[%s276] sm:$0xc] %vm273, %v272
    %s278 = scalar_lea.vmem [#allocation2], 44
    %279 = vst.msk [vmem:[%s278] sm:$0x30] %vm273, %v272
    %s280 = scalar_lea.vmem [#allocation2], 50
    %281 = vst.msk [vmem:[%s280] sm:$0xc0] %vm273, %v272
    %s282 = scalar_lea.vmem [#allocation0], 3
    %v283 = vld [vmem:[%s282] sm:$0x1]
    %s284 = scalar_lea.vmem [#allocation0], 123
    %s285 = smov 6
    %v286 = vld [vmem:[%s284] ss:$-56 sm:%s285]
    %vm287 = vcmask 1042433
    %v288 = vsel %vm287, %v286, %v283
    %s289 = scalar_lea.vmem [#allocation0], 243
    %s290 = smov 24
    %v291 = vld [vmem:[%s289] ss:$-56 sm:%s290]
    %vm292 = vcmask 1044483
    %v293 = vsel %vm292, %v291, %v288
    %s294 = scalar_lea.vmem [#allocation0], 363
    %s295 = smov 96
    %v296 = vld [vmem:[%s294] ss:$-56 sm:%s295]
    %vm297 = vcmask 1046533
    %v298 = vsel %vm297, %v296, %v293
    %s299 = scalar_lea.vmem [#allocation0], 84
    %v300 = vld [vmem:[%s299] sm:$0x80]
    %vm301 = vcmask 1047559
    %v302 = vsel %vm301, %v300, %v298
    %303 = vrot.lane.b32.xlu0 %v302, 48
    %v304 = vpop.permute.xlu0 %303
    %vm305 = vcmask 523648
    %306 = vst.msk [vmem:[#allocation2] sm:$0x3] %vm305, %v304
    %s307 = scalar_lea.vmem [#allocation2], 6
    %308 = vst.msk [vmem:[%s307] sm:$0xc] %vm305, %v304
    %s309 = scalar_lea.vmem [#allocation2], 12
    %310 = vst.msk [vmem:[%s309] sm:$0x30] %vm305, %v304
    %s311 = scalar_lea.vmem [#allocation2], 18
    %312 = vst.msk [vmem:[%s311] sm:$0xc0] %vm305, %v304
    %s313 = scalar_lea.vmem [#allocation0], 35
    %v314 = vld [vmem:[%s313] sm:$0x1]
    %s315 = scalar_lea.vmem [#allocation0], 155
    %s316 = smov 6
    %v317 = vld [vmem:[%s315] ss:$-56 sm:%s316]
    %vm318 = vcmask 1042433
    %v319 = vsel %vm318, %v317, %v314
    %s320 = scalar_lea.vmem [#allocation0], 275
    %s321 = smov 24
    %v322 = vld [vmem:[%s320] ss:$-56 sm:%s321]
    %vm323 = vcmask 1044483
    %v324 = vsel %vm323, %v322, %v319
    %s325 = scalar_lea.vmem [#allocation0], 395
    %s326 = smov 96
    %v327 = vld [vmem:[%s325] ss:$-56 sm:%s326]
    %vm328 = vcmask 1046533
    %v329 = vsel %vm328, %v327, %v324
    %s330 = scalar_lea.vmem [#allocation0], 116
    %v331 = vld [vmem:[%s330] sm:$0x80]
    %vm332 = vcmask 1047559
    %v333 = vsel %vm332, %v331, %v329
    %334 = vrot.lane.b32.xlu0 %v333, 48
    %v335 = vpop.permute.xlu0 %334
    %vm336 = vcmask 523648
    %s337 = scalar_lea.vmem [#allocation2], 32
    %338 = vst.msk [vmem:[%s337] sm:$0x3] %vm336, %v335
    %s339 = scalar_lea.vmem [#allocation2], 38
    %340 = vst.msk [vmem:[%s339] sm:$0xc] %vm336, %v335
    %s341 = scalar_lea.vmem [#allocation2], 44
    %342 = vst.msk [vmem:[%s341] sm:$0x30] %vm336, %v335
    %s343 = scalar_lea.vmem [#allocation2], 50
    %344 = vst.msk [vmem:[%s343] sm:$0xc0] %vm336, %v335
    %s345 = scalar_lea.vmem [#allocation0], 2
    %v346 = vld [vmem:[%s345] sm:$0x1]
    %s347 = scalar_lea.vmem [#allocation0], 122
    %s348 = smov 6
    %v349 = vld [vmem:[%s347] ss:$-56 sm:%s348]
    %vm350 = vcmask 1042433
    %v351 = vsel %vm350, %v349, %v346
    %s352 = scalar_lea.vmem [#allocation0], 242
    %s353 = smov 24
    %v354 = vld [vmem:[%s352] ss:$-56 sm:%s353]
    %vm355 = vcmask 1044483
    %v356 = vsel %vm355, %v354, %v351
    %s357 = scalar_lea.vmem [#allocation0], 362
    %s358 = smov 96
    %v359 = vld [vmem:[%s357] ss:$-56 sm:%s358]
    %vm360 = vcmask 1046533
    %v361 = vsel %vm360, %v359, %v356
    %s362 = scalar_lea.vmem [#allocation0], 83
    %v363 = vld [vmem:[%s362] sm:$0x80]
    %vm364 = vcmask 1047559
    %v365 = vsel %vm364, %v363, %v361
    %366 = vrot.lane.b32.xlu0 %v365, 32
    %v367 = vpop.permute.xlu0 %366
    %vm368 = vcmask 392448
    %369 = vst.msk [vmem:[#allocation2] sm:$0x3] %vm368, %v367
    %s370 = scalar_lea.vmem [#allocation2], 6
    %371 = vst.msk [vmem:[%s370] sm:$0xc] %vm368, %v367
    %s372 = scalar_lea.vmem [#allocation2], 12
    %373 = vst.msk [vmem:[%s372] sm:$0x30] %vm368, %v367
    %s374 = scalar_lea.vmem [#allocation2], 18
    %375 = vst.msk [vmem:[%s374] sm:$0xc0] %vm368, %v367
    %s376 = scalar_lea.vmem [#allocation0], 34
    %v377 = vld [vmem:[%s376] sm:$0x1]
    %s378 = scalar_lea.vmem [#allocation0], 154
    %s379 = smov 6
    %v380 = vld [vmem:[%s378] ss:$-56 sm:%s379]
    %vm381 = vcmask 1042433
    %v382 = vsel %vm381, %v380, %v377
    %s383 = scalar_lea.vmem [#allocation0], 274
    %s384 = smov 24
    %v385 = vld [vmem:[%s383] ss:$-56 sm:%s384]
    %vm386 = vcmask 1044483
    %v387 = vsel %vm386, %v385, %v382
    %s388 = scalar_lea.vmem [#allocation0], 394
    %s389 = smov 96
    %v390 = vld [vmem:[%s388] ss:$-56 sm:%s389]
    %vm391 = vcmask 1046533
    %v392 = vsel %vm391, %v390, %v387
    %s393 = scalar_lea.vmem [#allocation0], 115
    %v394 = vld [vmem:[%s393] sm:$0x80]
    %vm395 = vcmask 1047559
    %v396 = vsel %vm395, %v394, %v392
    %397 = vrot.lane.b32.xlu0 %v396, 32
    %v398 = vpop.permute.xlu0 %397
    %vm399 = vcmask 392448
    %s400 = scalar_lea.vmem [#allocation2], 32
    %401 = vst.msk [vmem:[%s400] sm:$0x3] %vm399, %v398
    %s402 = scalar_lea.vmem [#allocation2], 38
    %403 = vst.msk [vmem:[%s402] sm:$0xc] %vm399, %v398
    %s404 = scalar_lea.vmem [#allocation2], 44
    %405 = vst.msk [vmem:[%s404] sm:$0x30] %vm399, %v398
    %s406 = scalar_lea.vmem [#allocation2], 50
    %407 = vst.msk [vmem:[%s406] sm:$0xc0] %vm399, %v398
    %s408 = scalar_lea.vmem [#allocation0], 1
    %v409 = vld [vmem:[%s408] sm:$0x1]
    %s410 = scalar_lea.vmem [#allocation0], 121
    %s411 = smov 6
    %v412 = vld [vmem:[%s410] ss:$-56 sm:%s411]
    %vm413 = vcmask 1042433
    %v414 = vsel %vm413, %v412, %v409
    %s415 = scalar_lea.vmem [#allocation0], 241
    %s416 = smov 24
    %v417 = vld [vmem:[%s415] ss:$-56 sm:%s416]
    %vm418 = vcmask 1044483
    %v419 = vsel %vm418, %v417, %v414
    %s420 = scalar_lea.vmem [#allocation0], 361
    %s421 = smov 96
    %v422 = vld [vmem:[%s420] ss:$-56 sm:%s421]
    %vm423 = vcmask 1046533
    %v424 = vsel %vm423, %v422, %v419
    %s425 = scalar_lea.vmem [#allocation0], 82
    %v426 = vld [vmem:[%s425] sm:$0x80]
    %vm427 = vcmask 1047559
    %v428 = vsel %vm427, %v426, %v424
    %429 = vrot.lane.b32.xlu0 %v428, 16
    %v430 = vpop.permute.xlu0 %429
    %vm431 = vcmask 261248
    %432 = vst.msk [vmem:[#allocation2] sm:$0x3] %vm431, %v430
    %s433 = scalar_lea.vmem [#allocation2], 6
    %434 = vst.msk [vmem:[%s433] sm:$0xc] %vm431, %v430
    %s435 = scalar_lea.vmem [#allocation2], 12
    %436 = vst.msk [vmem:[%s435] sm:$0x30] %vm431, %v430
    %s437 = scalar_lea.vmem [#allocation2], 18
    %438 = vst.msk [vmem:[%s437] sm:$0xc0] %vm431, %v430
    %s439 = scalar_lea.vmem [#allocation0], 33
    %v440 = vld [vmem:[%s439] sm:$0x1]
    %s441 = scalar_lea.vmem [#allocation0], 153
    %s442 = smov 6
    %v443 = vld [vmem:[%s441] ss:$-56 sm:%s442]
    %vm444 = vcmask 1042433
    %v445 = vsel %vm444, %v443, %v440
    %s446 = scalar_lea.vmem [#allocation0], 273
    %s447 = smov 24
    %v448 = vld [vmem:[%s446] ss:$-56 sm:%s447]
    %vm449 = vcmask 1044483
    %v450 = vsel %vm449, %v448, %v445
    %s451 = scalar_lea.vmem [#allocation0], 393
    %s452 = smov 96
    %v453 = vld [vmem:[%s451] ss:$-56 sm:%s452]
    %vm454 = vcmask 1046533
    %v455 = vsel %vm454, %v453, %v450
    %s456 = scalar_lea.vmem [#allocation0], 114
    %v457 = vld [vmem:[%s456] sm:$0x80]
    %vm458 = vcmask 1047559
    %v459 = vsel %vm458, %v457, %v455
    %460 = vrot.lane.b32.xlu0 %v459, 16
    %v461 = vpop.permute.xlu0 %460
    %vm462 = vcmask 261248
    %s463 = scalar_lea.vmem [#allocation2], 32
    %464 = vst.msk [vmem:[%s463] sm:$0x3] %vm462, %v461
    %s465 = scalar_lea.vmem [#allocation2], 38
    %466 = vst.msk [vmem:[%s465] sm:$0xc] %vm462, %v461
    %s467 = scalar_lea.vmem [#allocation2], 44
    %468 = vst.msk [vmem:[%s467] sm:$0x30] %vm462, %v461
    %s469 = scalar_lea.vmem [#allocation2], 50
    %470 = vst.msk [vmem:[%s469] sm:$0xc0] %vm462, %v461
    %s472 = sshllo.u32 0, 2
    %v474 = vld [vmem:[#allocation2] sm:%s472]
    %s475 = sshllo.u32 0, 2
    %476 = vst [vmem:[%s1] sm:%s475] %v474
    %s477 = scalar_lea.vmem [#allocation2], 8
    %v478 = vld [vmem:[%s477] sm:%s472]
    %s479 = sshllo.u32 0, 2
    %s480 = scalar_lea.vmem %s1, 2
    %481 = vst [vmem:[%s480] sm:%s479] %v478
    %s482 = scalar_lea.vmem [#allocation2], 16
    %v483 = vld [vmem:[%s482] sm:%s472]
    %s484 = sshllo.u32 0, 2
    %s485 = smul.addr 2, 2
    %s486 = scalar_lea.vmem %s1, %s485
    %487 = vst [vmem:[%s486] sm:%s484] %v483
    %s488 = scalar_lea.vmem [#allocation2], 24
    %v489 = vld [vmem:[%s488] sm:%s472]
    %s490 = sshllo.u32 0, 2
    %s491 = smul.addr 2, 3
    %s492 = scalar_lea.vmem %s1, %s491
    %493 = vst [vmem:[%s492] sm:%s490] %v489
    %s494 = scalar_lea.vmem [#allocation2], 32
    %v495 = vld [vmem:[%s494] sm:%s472]
    %s496 = sshllo.u32 0, 2
    %s497 = smul.addr 2, 4
    %s498 = scalar_lea.vmem %s1, %s497
    %499 = vst [vmem:[%s498] sm:%s496] %v495
    %s500 = scalar_lea.vmem [#allocation2], 40
    %v501 = vld [vmem:[%s500] sm:%s472]
    %s502 = sshllo.u32 0, 2
    %s503 = smul.addr 2, 5
    %s504 = scalar_lea.vmem %s1, %s503
    %505 = vst [vmem:[%s504] sm:%s502] %v501
    %s506 = scalar_lea.vmem [#allocation2], 48
    %v507 = vld [vmem:[%s506] sm:%s472]
    %s508 = sshllo.u32 0, 2
    %s509 = smul.addr 2, 6
    %s510 = scalar_lea.vmem %s1, %s509
    %511 = vst [vmem:[%s510] sm:%s508] %v507
    %s512 = scalar_lea.vmem [#allocation2], 56
    %v513 = vld [vmem:[%s512] sm:%s472]
    %s514 = sshllo.u32 0, 2
    %s515 = smul.addr 2, 7
    %s516 = scalar_lea.vmem %s1, %s515
    %517 = vst [vmem:[%s516] sm:%s514] %v513
    %518 = vsyncpa [#allocation1], 1

// kernel: jaccard_loss.1
$region0: #{jaccard_loss.1}
  #allocation0 [shape = 'u32[]', space=smem, size = 0x4, offset = 0x4, fixed_abs, tag = 'smem constant byte address 0x4 - core index']
  #allocation1 [shape = 'u32[144,128]{1,0:T(1,128)}', space=vmem, size = 0x12000, scoped, tag = 'internal scratch']
  #allocation2 [shape = 'f32[2,8,128]{2,1,0:T(8,128)}', space=vmem, size = 0x2000, scoped, tag = 'scratch operand']
  #allocation3 [shape = 'f32[2,8,128]{2,1,0:T(8,128)}', space=vmem, size = 0x2000, scoped, tag = 'scratch operand']
  #allocation4 [shape = 'f32[2,8,128]{2,1,0:T(8,128)}', space=vmem, size = 0x2000, scoped, tag = 'scratch operand']
  %s0 = inlined_call_operand.vmem [shape: f32[2,16,128], index: 0, kind: input, shape index: {}]
  %s1 = inlined_call_operand.vmem [shape: f32[2,16,128], index: 1, kind: input, shape index: {}]
  %s2 = inlined_call_operand.vmem [shape: f32[2,2,128], index: 2, kind: output, shape index: {0}]
  %s3 = inlined_call_operand.vmem [shape: f32[2,2,128], index: 3, kind: output, shape index: {1}]
  %s4 = inlined_call_operand.vmem [shape: f32[2,2,128], index: 4, kind: output, shape index: {2}]
  %5 = xla_tuple %s2, %s3, %s4
  %s6 = sld [smem:[#allocation0]]
  $region141: #{jaccard_loss.1} parent=0
    _
  %s8 = ssub.s32 1, %s6
  %s9 = scalar_select 0, %s8, %s6
  $region1: #{jaccard_loss.1} parent=0
    #allocation5 [shape = 'u8[16384]{0}', space=vmem, size = 0x4000, scoped, tag = 'input window, operand 0']
    #allocation6 [shape = 'u8[16384]{0}', space=vmem, size = 0x4000, scoped, tag = 'input window, operand 1']
    loop: start=0, step=1, limit=4
    $region2: #{jaccard_loss.1} parent=1 // loop_pre_header
      _
    $region3: #{jaccard_loss.1} parent=1 // loop_header
      %s11 = sphi 0, %s15
      %p12 = scmp.ge.s32.totalorder %s11, 4
      %s18 = sphi 0, %s30
      %s19 = sphi 0, %s26
      %s20 = sphi 0, %s18
      %s21 = sphi 0, %s19
      %s22 = sphi 0, %s20
      %s23 = sphi 0, %s21
      %s35 = sphi 0, %s37
      %s38 = sphi 0, %s35
      %s39 = sphi 0, %s38
      %s55 = sphi 0, %s39
      %s63 = sphi 0, %s65
      %s66 = sphi 0, %s63
      %s67 = sphi 0, %s66
      %s83 = sphi 0, %s67
      %s89 = sphi 0, %s91
      %s92 = sphi 0, %s89
      %s93 = sphi 0, %s92
      %s109 = sphi 0, %s93
      %s115 = sphi 0, %s117
      %s118 = sphi 0, %s115
      %s119 = sphi 0, %s118
      %s135 = sphi 0, %s119
      %s141 = sphi 0, %s143
      %s144 = sphi 0, %s141
      %s145 = sphi 0, %s144
      %s161 = sphi 0, %s145
    $region4: #{jaccard_loss.1} parent=1 // loop_header_branch
      %14 = sbr.rel (%p12) target = $region8
    $region5: #{jaccard_loss.1} parent=1 // loop_body
      %s16 = ssub.s32 %s11, 1
      %s17 = ssub.s32 %s11, 2
      %s24 = sadd.s32 1, %s19
      %p25 = scmp.ge.s32.totalorder %s24, 1
      %s26 = scalar_select %p25, 0, %s24
      %s27 = sadd.s32 1, %s18
      %s28 = scalar_select %p25, %s27, %s18
      %p29 = scmp.ge.s32.totalorder %s28, 2
      %s30 = scalar_select %p29, 0, %s28
      %s31 = sadd.s32 %s18, %s19
      %s32 = sadd.s32 %s30, %s26
      %s33 = ssub.s32 %s31, %s32
      %p34 = scmp.eq.s32.totalorder %s33, 0
      %s36 = sadd.s32 %s35, 1
      %s37 = scalar_select %p34, %s35, %s36
      %p40 = pneg %p34
      %p41 = scmp.eq.s32.totalorder %s11, 1
      %p42 = por %p40, %p41
      %p43 = scmp.ne.s32.totalorder %s35, %s38
      %p44 = scmp.eq.s32.totalorder %s11, 0
      %p45 = por %p43, %p44
      %p46 = scmp.ne.s32.totalorder %s35, %s38
      %p47 = scmp.eq.s32.totalorder %s16, 1
      %p48 = por %p46, %p47
      %p49 = scmp.ne.s32.totalorder %s38, %s39
      %p50 = scmp.eq.s32.totalorder %s16, 0
      %p51 = por %p49, %p50
      %p52 = scmp.ne.s32.totalorder %s38, %s39
      %p53 = scmp.eq.s32.totalorder %s17, 1
      %p54 = por %p52, %p53
      %p56 = scmp.ne.s32.totalorder %s39, %s55
      %p57 = scmp.eq.s32.totalorder %s17, 0
      %p58 = por %p56, %p57
      %s59 = sadd.s32 %s18, %s19
      %s60 = sadd.s32 %s30, %s26
      %s61 = ssub.s32 %s59, %s60
      %p62 = scmp.eq.s32.totalorder %s61, 0
      %s64 = sadd.s32 %s63, 1
      %s65 = scalar_select %p62, %s63, %s64
      %p68 = pneg %p62
      %p69 = scmp.eq.s32.totalorder %s11, 1
      %p70 = por %p68, %p69
      %p71 = scmp.ne.s32.totalorder %s63, %s66
      %p72 = scmp.eq.s32.totalorder %s11, 0
      %p73 = por %p71, %p72
      %p74 = scmp.ne.s32.totalorder %s63, %s66
      %p75 = scmp.eq.s32.totalorder %s16, 1
      %p76 = por %p74, %p75
      %p77 = scmp.ne.s32.totalorder %s66, %s67
      %p78 = scmp.eq.s32.totalorder %s16, 0
      %p79 = por %p77, %p78
      %p80 = scmp.ne.s32.totalorder %s66, %s67
      %p81 = scmp.eq.s32.totalorder %s17, 1
      %p82 = por %p80, %p81
      %p84 = scmp.ne.s32.totalorder %s67, %s83
      %p85 = scmp.eq.s32.totalorder %s17, 0
      %p86 = por %p84, %p85
      %s87 = ssub.s32 %s18, %s30
      %p88 = scmp.eq.s32.totalorder %s87, 0
      %s90 = sadd.s32 %s89, 1
      %s91 = scalar_select %p88, %s89, %s90
      %p94 = pneg %p88
      %p95 = scmp.eq.s32.totalorder %s11, 1
      %p96 = por %p94, %p95
      %p97 = scmp.ne.s32.totalorder %s89, %s92
      %p98 = scmp.eq.s32.totalorder %s11, 0
      %p99 = por %p97, %p98
      %p100 = scmp.ne.s32.totalorder %s89, %s92
      %p101 = scmp.eq.s32.totalorder %s16, 1
      %p102 = por %p100, %p101
      %p103 = scmp.ne.s32.totalorder %s92, %s93
      %p104 = scmp.eq.s32.totalorder %s16, 0
      %p105 = por %p103, %p104
      %p106 = scmp.ne.s32.totalorder %s92, %s93
      %p107 = scmp.eq.s32.totalorder %s17, 1
      %p108 = por %p106, %p107
      %p110 = scmp.ne.s32.totalorder %s93, %s109
      %p111 = scmp.eq.s32.totalorder %s17, 0
      %p112 = por %p110, %p111
      %s113 = ssub.s32 %s18, %s30
      %p114 = scmp.eq.s32.totalorder %s113, 0
      %s116 = sadd.s32 %s115, 1
      %s117 = scalar_select %p114, %s115, %s116
      %p120 = pneg %p114
      %p121 = scmp.eq.s32.totalorder %s11, 1
      %p122 = por %p120, %p121
      %p123 = scmp.ne.s32.totalorder %s115, %s118
      %p124 = scmp.eq.s32.totalorder %s11, 0
      %p125 = por %p123, %p124
      %p126 = scmp.ne.s32.totalorder %s115, %s118
      %p127 = scmp.eq.s32.totalorder %s16, 1
      %p128 = por %p126, %p127
      %p129 = scmp.ne.s32.totalorder %s118, %s119
      %p130 = scmp.eq.s32.totalorder %s16, 0
      %p131 = por %p129, %p130
      %p132 = scmp.ne.s32.totalorder %s118, %s119
      %p133 = scmp.eq.s32.totalorder %s17, 1
      %p134 = por %p132, %p133
      %p136 = scmp.ne.s32.totalorder %s119, %s135
      %p137 = scmp.eq.s32.totalorder %s17, 0
      %p138 = por %p136, %p137
      %s139 = ssub.s32 %s18, %s30
      %p140 = scmp.eq.s32.totalorder %s139, 0
      %s142 = sadd.s32 %s141, 1
      %s143 = scalar_select %p140, %s141, %s142
      %p146 = pneg %p140
      %p147 = scmp.eq.s32.totalorder %s11, 1
      %p148 = por %p146, %p147
      %p149 = scmp.ne.s32.totalorder %s141, %s144
      %p150 = scmp.eq.s32.totalorder %s11, 0
      %p151 = por %p149, %p150
      %p152 = scmp.ne.s32.totalorder %s141, %s144
      %p153 = scmp.eq.s32.totalorder %s16, 1
      %p154 = por %p152, %p153
      %p155 = scmp.ne.s32.totalorder %s144, %s145
      %p156 = scmp.eq.s32.totalorder %s16, 0
      %p157 = por %p155, %p156
      %p158 = scmp.ne.s32.totalorder %s144, %s145
      %p159 = scmp.eq.s32.totalorder %s17, 1
      %p160 = por %p158, %p159
      %p162 = scmp.ne.s32.totalorder %s145, %s161
      %p163 = scmp.eq.s32.totalorder %s17, 0
      %p164 = por %p162, %p163
      %p165 = scmp.le.s32.totalorder 1, %s11
      %p166 = scmp.lt.s32.totalorder %s11, 3
      %p167 = pnand %p165, %p166
      %p168 = pneg %p167
      // Predicated region
      $region9: #{jaccard_loss.1} parent=5 // pred_check
        _
      $region10: #{jaccard_loss.1} parent=5 // pred_check_branch
        %170 = sbr.rel (%p167) target = $region12
      $region11: #{jaccard_loss.1} parent=5 // pred_region
        %s171 = ssub.s32 %s11, 1
      $region12: #{jaccard_loss.1} parent=5 // pred_fallthru
        _
      %p172 = scmp.lt.s32.totalorder %s11, 2
      // Predicated region
      $region13: #{jaccard_loss.1} parent=5 // pred_check
        %p173 = pneg %p172
      $region14: #{jaccard_loss.1} parent=5 // pred_check_branch
        %175 = sbr.rel (%p173) target = $region16
      $region15: #{jaccard_loss.1} parent=5 // pred_region
        // Predicated region
        $region17: #{jaccard_loss.1} parent=15 // pred_check
          %p176 = pneg %p45
        $region18: #{jaccard_loss.1} parent=15 // pred_check_branch
          %178 = sbr.rel (%p176) target = $region20
        $region19: #{jaccard_loss.1} parent=15 // pred_region
          %s179 = sand.u32 %s35, 1
          %s180 = sand.u32 %s35, 1
          %s181 = smul.addr %s180, 16
          %s182 = scalar_lea.vmem [#allocation5], %s181
          %s183 = sadd.s32 %s18, %s19
          %s184 = smul.addr %s183, 8
          %s185 = scalar_lea.vmem %s0, %s184
          // Predicated region
          $region21: #{jaccard_loss.1} parent=19 // pred_check
            _
          $region22: #{jaccard_loss.1} parent=19 // pred_check_branch
            %187 = sbr.rel (0) target = $region24
          $region23: #{jaccard_loss.1} parent=19 // pred_region
            // Predicated region
            $region25: #{jaccard_loss.1} parent=23 // pred_check
              _
            $region26: #{jaccard_loss.1} parent=23 // pred_check_branch
              %189 = sbr.rel (0) target = $region28
            $region27: #{jaccard_loss.1} parent=23 // pred_region
              // Predicated region
              $region40: #{jaccard_loss.1} parent=27 // pred_check
                _
              $region41: #{jaccard_loss.1} parent=27 // pred_check_branch
                %206 = sbr.rel (0) target = $region43
              $region42: #{jaccard_loss.1} parent=27 // pred_region
                loop: start=0, step=1, limit=1
                $region44: #{jaccard_loss.1} parent=42 // loop_pre_header
                  _
                $region45: #{jaccard_loss.1} parent=42 // loop_header
                  %s208 = sphi 0, %s212
                  %p209 = scmp.ge.s32.totalorder %s208, 1
                  %s213 = sphi %s185, %s185
                  %s214 = sphi %s182, %s182
                $region46: #{jaccard_loss.1} parent=42 // loop_header_branch
                  %211 = sbr.rel (%p209) target = $region50
                $region47: #{jaccard_loss.1} parent=42 // loop_body
                  %v215 = vld [vmem:[%s213] sm:$0xff]
                  %216 = vst [vmem:[%s214] sm:$0xff] %v215
                  %v217 = vld [vmem:[%s213 + $0x10] sm:$0xff]
                  %218 = vst [vmem:[%s214 + $0x8] sm:$0xff] %v217
                $region48: #{jaccard_loss.1} parent=42 // loop_footer
                  %s212 = sadd.s32 1, %s208
                $region49: #{jaccard_loss.1} parent=42 // loop_footer_branch
                  %207 = sbr.rel target = $region45
                $region50: #{jaccard_loss.1} parent=42 // loop_exit
                  _
              $region43: #{jaccard_loss.1} parent=27 // pred_fallthru
                _
              // Predicated region
              $region51: #{jaccard_loss.1} parent=27 // pred_check
                _
              $region52: #{jaccard_loss.1} parent=27 // pred_check_branch
                %220 = sbr.rel target = $region54
              $region53: #{jaccard_loss.1} parent=27 // pred_region
                _
              $region54: #{jaccard_loss.1} parent=27 // pred_fallthru
                _
            $region28: #{jaccard_loss.1} parent=23 // pred_fallthru
              _
            // Predicated region
            $region29: #{jaccard_loss.1} parent=23 // pred_check
              _
            $region30: #{jaccard_loss.1} parent=23 // pred_check_branch
              %191 = sbr.rel target = $region32
            $region31: #{jaccard_loss.1} parent=23 // pred_region
              loop: start=0, step=1, limit=1
              $region33: #{jaccard_loss.1} parent=31 // loop_pre_header
                _
              $region34: #{jaccard_loss.1} parent=31 // loop_header
                %s194 = sphi 0, %s198
                %p195 = scmp.ge.s32.totalorder %s194, 1
                %s199 = sphi %s185, %s185
                %s200 = sphi %s182, %s182
              $region35: #{jaccard_loss.1} parent=31 // loop_header_branch
                %197 = sbr.rel (%p195) target = $region39
              $region36: #{jaccard_loss.1} parent=31 // loop_body
                %v201 = vld [vmem:[%s199] sm:$0xff]
                %202 = vst [vmem:[%s200] sm:$0xff] %v201
                %v203 = vld [vmem:[%s199 + $0x10] sm:$0xff]
                %204 = vst [vmem:[%s200 + $0x8] sm:$0xff] %v203
              $region37: #{jaccard_loss.1} parent=31 // loop_footer
                %s198 = sadd.s32 1, %s194
              $region38: #{jaccard_loss.1} parent=31 // loop_footer_branch
                %193 = sbr.rel target = $region34
              $region39: #{jaccard_loss.1} parent=31 // loop_exit
                _
            $region32: #{jaccard_loss.1} parent=23 // pred_fallthru
              _
          $region24: #{jaccard_loss.1} parent=19 // pred_fallthru
            _
          %221 = vnop
        $region20: #{jaccard_loss.1} parent=15 // pred_fallthru
          _
        // Predicated region
        $region55: #{jaccard_loss.1} parent=15 // pred_check
          %p222 = pneg %p73
        $region56: #{jaccard_loss.1} parent=15 // pred_check_branch
          %224 = sbr.rel (%p222) target = $region58
        $region57: #{jaccard_loss.1} parent=15 // pred_region
          %s225 = sand.u32 %s63, 1
          %s226 = sand.u32 %s63, 1
          %s227 = smul.addr %s226, 16
          %s228 = scalar_lea.vmem [#allocation6], %s227
          %s229 = sadd.s32 %s18, %s19
          %s230 = smul.addr %s229, 8
          %s231 = scalar_lea.vmem %s1, %s230
          // Predicated region
          $region59: #{jaccard_loss.1} parent=57 // pred_check
            _
          $region60: #{jaccard_loss.1} parent=57 // pred_check_branch
            %233 = sbr.rel (0) target = $region62
          $region61: #{jaccard_loss.1} parent=57 // pred_region
            // Predicated region
            $region63: #{jaccard_loss.1} parent=61 // pred_check
              _
            $region64: #{jaccard_loss.1} parent=61 // pred_check_branch
              %235 = sbr.rel (0) target = $region66
            $region65: #{jaccard_loss.1} parent=61 // pred_region
              // Predicated region
              $region78: #{jaccard_loss.1} parent=65 // pred_check
                _
              $region79: #{jaccard_loss.1} parent=65 // pred_check_branch
                %252 = sbr.rel (0) target = $region81
              $region80: #{jaccard_loss.1} parent=65 // pred_region
                loop: start=0, step=1, limit=1
                $region82: #{jaccard_loss.1} parent=80 // loop_pre_header
                  _
                $region83: #{jaccard_loss.1} parent=80 // loop_header
                  %s254 = sphi 0, %s258
                  %p255 = scmp.ge.s32.totalorder %s254, 1
                  %s259 = sphi %s231, %s231
                  %s260 = sphi %s228, %s228
                $region84: #{jaccard_loss.1} parent=80 // loop_header_branch
                  %257 = sbr.rel (%p255) target = $region88
                $region85: #{jaccard_loss.1} parent=80 // loop_body
                  %v261 = vld [vmem:[%s259] sm:$0xff]
                  %262 = vst [vmem:[%s260] sm:$0xff] %v261
                  %v263 = vld [vmem:[%s259 + $0x10] sm:$0xff]
                  %264 = vst [vmem:[%s260 + $0x8] sm:$0xff] %v263
                $region86: #{jaccard_loss.1} parent=80 // loop_footer
                  %s258 = sadd.s32 1, %s254
                $region87: #{jaccard_loss.1} parent=80 // loop_footer_branch
                  %253 = sbr.rel target = $region83
                $region88: #{jaccard_loss.1} parent=80 // loop_exit
                  _
              $region81: #{jaccard_loss.1} parent=65 // pred_fallthru
                _
              // Predicated region
              $region89: #{jaccard_loss.1} parent=65 // pred_check
                _
              $region90: #{jaccard_loss.1} parent=65 // pred_check_branch
                %266 = sbr.rel target = $region92
              $region91: #{jaccard_loss.1} parent=65 // pred_region
                _
              $region92: #{jaccard_loss.1} parent=65 // pred_fallthru
                _
            $region66: #{jaccard_loss.1} parent=61 // pred_fallthru
              _
            // Predicated region
            $region67: #{jaccard_loss.1} parent=61 // pred_check
              _
            $region68: #{jaccard_loss.1} parent=61 // pred_check_branch
              %237 = sbr.rel target = $region70
            $region69: #{jaccard_loss.1} parent=61 // pred_region
              loop: start=0, step=1, limit=1
              $region71: #{jaccard_loss.1} parent=69 // loop_pre_header
                _
              $region72: #{jaccard_loss.1} parent=69 // loop_header
                %s240 = sphi 0, %s244
                %p241 = scmp.ge.s32.totalorder %s240, 1
                %s245 = sphi %s231, %s231
                %s246 = sphi %s228, %s228
              $region73: #{jaccard_loss.1} parent=69 // loop_header_branch
                %243 = sbr.rel (%p241) target = $region77
              $region74: #{jaccard_loss.1} parent=69 // loop_body
                %v247 = vld [vmem:[%s245] sm:$0xff]
                %248 = vst [vmem:[%s246] sm:$0xff] %v247
                %v249 = vld [vmem:[%s245 + $0x10] sm:$0xff]
                %250 = vst [vmem:[%s246 + $0x8] sm:$0xff] %v249
              $region75: #{jaccard_loss.1} parent=69 // loop_footer
                %s244 = sadd.s32 1, %s240
              $region76: #{jaccard_loss.1} parent=69 // loop_footer_branch
                %239 = sbr.rel target = $region72
              $region77: #{jaccard_loss.1} parent=69 // loop_exit
                _
            $region70: #{jaccard_loss.1} parent=61 // pred_fallthru
              _
          $region62: #{jaccard_loss.1} parent=57 // pred_fallthru
            _
          %267 = vnop
        $region58: #{jaccard_loss.1} parent=15 // pred_fallthru
          _
      $region16: #{jaccard_loss.1} parent=5 // pred_fallthru
        _
      %p268 = scmp.le.s32.totalorder 1, %s11
      %p269 = scmp.lt.s32.totalorder %s11, 3
      %p270 = pnand %p268, %p269
      %p271 = pneg %p270
      // Predicated region
      $region93: #{jaccard_loss.1} parent=5 // pred_check
        _
      $region94: #{jaccard_loss.1} parent=5 // pred_check_branch
        %273 = sbr.rel (%p270) target = $region96
      $region95: #{jaccard_loss.1} parent=5 // pred_region
        %s274 = ssub.s32 %s11, 1
        %s275 = sand.u32 %s38, 1
        %s276 = sand.u32 %s38, 1
        %s277 = smul.addr %s276, 16
        %s278 = scalar_lea.vmem [#allocation5], %s277
        // Predicated region
        $region97: #{jaccard_loss.1} parent=95 // pred_check
          %p279 = pneg %p51
        $region98: #{jaccard_loss.1} parent=95 // pred_check_branch
          %281 = sbr.rel (%p279) target = $region100
        $region99: #{jaccard_loss.1} parent=95 // pred_region
          _
        $region100: #{jaccard_loss.1} parent=95 // pred_fallthru
          _
        %s282 = sand.u32 %s66, 1
        %s283 = sand.u32 %s66, 1
        %s284 = smul.addr %s283, 16
        %s285 = scalar_lea.vmem [#allocation6], %s284
        // Predicated region
        $region101: #{jaccard_loss.1} parent=95 // pred_check
          %p286 = pneg %p79
        $region102: #{jaccard_loss.1} parent=95 // pred_check_branch
          %288 = sbr.rel (%p286) target = $region104
        $region103: #{jaccard_loss.1} parent=95 // pred_region
          _
        $region104: #{jaccard_loss.1} parent=95 // pred_fallthru
          _
        %s289 = sand.u32 %s38, 1
        %s290 = sand.u32 %s38, 1
        %s291 = smul.addr %s290, 16
        %s292 = scalar_lea.vmem [#allocation5], %s291
        %p293 = pneg %p51
        %p294 = pneg %p48
        %s295 = sand.u32 %s66, 1
        %s296 = sand.u32 %s66, 1
        %s297 = smul.addr %s296, 16
        %s298 = scalar_lea.vmem [#allocation6], %s297
        %p299 = pneg %p79
        %p300 = pneg %p76
        %p301 = pneg %p105
        %p302 = pneg %p102
        %p303 = scmp.lt.s32.totalorder %s20, 1
        %s304 = scalar_select %p303, %s20, 1
        %s305 = smul.addr %s304, 2
        %s306 = scalar_lea.vmem %s2, %s305
        %p307 = pneg %p131
        %p308 = pneg %p128
        %p309 = scmp.lt.s32.totalorder %s20, 1
        %s310 = scalar_select %p309, %s20, 1
        %s311 = smul.addr %s310, 2
        %s312 = scalar_lea.vmem %s3, %s311
        %p313 = pneg %p157
        %p314 = pneg %p154
        %p315 = scmp.lt.s32.totalorder %s20, 1
        %s316 = scalar_select %p315, %s20, 1
        %s317 = smul.addr %s316, 2
        %s318 = scalar_lea.vmem %s4, %s317
        %s319 = sadd.s32 %s20, %s21
        %s320 = sadd.s32 %s20, %s21
        %p321 = scmp.lt.s32.totalorder %s20, 1
        %s322 = scalar_select %p321, %s20, 1
        %s323 = smul.addr %s322, 2
        %s324 = scalar_lea.vmem %s2, %s323
        %p325 = scmp.lt.s32.totalorder %s20, 1
        %s326 = scalar_select %p325, %s20, 1
        %s327 = smul.addr %s326, 2
        %s328 = scalar_lea.vmem %s3, %s327
        %p329 = scmp.lt.s32.totalorder %s20, 1
        %s330 = scalar_select %p329, %s20, 1
        %s331 = smul.addr %s330, 2
        %s332 = scalar_lea.vmem %s4, %s331
        %p333 = scmp.eq.s32.totalorder %s21, 0
        // Predicated region
        $region105: #{jaccard_loss.1} parent=95 // pred_check
          %p334 = pneg %p333
        $region106: #{jaccard_loss.1} parent=95 // pred_check_branch
          %336 = sbr.rel (%p334) target = $region108
        $region107: #{jaccard_loss.1} parent=95 // pred_region
          %337 = vst [vmem:[#allocation2] sm:$0xff] 0.0
          %338 = vst [vmem:[#allocation2 + $0x8] sm:$0xff] 0.0
          %339 = vst [vmem:[#allocation3] sm:$0xff] 0.0
          %340 = vst [vmem:[#allocation3 + $0x8] sm:$0xff] 0.0
          %341 = vst [vmem:[#allocation4] sm:$0xff] 0.0
          %342 = vst [vmem:[#allocation4 + $0x8] sm:$0xff] 0.0
        $region108: #{jaccard_loss.1} parent=95 // pred_fallthru
          _
        %v343 = vld [vmem:[%s278] sm:$0xff]
        %v344 = vld [vmem:[%s278 + $0x8] sm:$0xff]
        %v345 = vld [vmem:[%s285] sm:$0xff]
        %v346 = vld [vmem:[%s285 + $0x8] sm:$0xff]
        %v347 = vld [vmem:[#allocation2] sm:$0xff]
        %v348 = vld [vmem:[#allocation2 + $0x8] sm:$0xff]
        %v349 = vmul.f32 %v343, %v345
        %v350 = vmul.f32 %v344, %v346
        %v351 = vadd.f32 %v347, %v349
        %v352 = vadd.f32 %v348, %v350
        %353 = vst [vmem:[#allocation2] sm:$0xff] %v351
        %354 = vst [vmem:[#allocation2 + $0x8] sm:$0xff] %v352
        %v355 = vld [vmem:[#allocation3] sm:$0xff]
        %v356 = vld [vmem:[#allocation3 + $0x8] sm:$0xff]
        %v357 = vmul.f32 %v343, %v343
        %v358 = vmul.f32 %v344, %v344
        %v359 = vadd.f32 %v355, %v357
        %v360 = vadd.f32 %v356, %v358
        %361 = vst [vmem:[#allocation3] sm:$0xff] %v359
        %362 = vst [vmem:[#allocation3 + $0x8] sm:$0xff] %v360
        %v363 = vld [vmem:[#allocation4] sm:$0xff]
        %v364 = vld [vmem:[#allocation4 + $0x8] sm:$0xff]
        %v365 = vmul.f32 %v345, %v345
        %v366 = vmul.f32 %v346, %v346
        %v367 = vadd.f32 %v363, %v365
        %v368 = vadd.f32 %v364, %v366
        %369 = vst [vmem:[#allocation4] sm:$0xff] %v367
        %370 = vst [vmem:[#allocation4 + $0x8] sm:$0xff] %v368
        // Predicated region
        $region109: #{jaccard_loss.1} parent=95 // pred_check
          %p371 = pneg %p333
        $region110: #{jaccard_loss.1} parent=95 // pred_check_branch
          %373 = sbr.rel (%p371) target = $region112
        $region111: #{jaccard_loss.1} parent=95 // pred_region
          %v374 = vld [vmem:[#allocation2] sm:$0xff]
          %v375 = vld [vmem:[#allocation2 + $0x8] sm:$0xff]
          %v376 = vrot.slane %v374, 4
          %v377 = vadd.f32 %v374, %v376
          %v378 = vrot.slane %v377, 2
          %v379 = vadd.f32 %v377, %v378
          %v380 = vrot.slane %v379, 1
          %v381 = vadd.f32 %v379, %v380
          %v382 = vrot.slane %v375, 4
          %v383 = vadd.f32 %v375, %v382
          %v384 = vrot.slane %v383, 2
          %v385 = vadd.f32 %v383, %v384
          %v386 = vrot.slane %v385, 1
          %v387 = vadd.f32 %v385, %v386
          %vm390 = vcmask 1041409
          %v391 = vsel %vm390, %v387, %v381
          %393 = vst [vmem:[%s324] sm:$0x3] %v391
          %v394 = vld [vmem:[#allocation3] sm:$0xff]
          %v395 = vld [vmem:[#allocation3 + $0x8] sm:$0xff]
          %v396 = vrot.slane %v394, 4
          %v397 = vadd.f32 %v394, %v396
          %v398 = vrot.slane %v397, 2
          %v399 = vadd.f32 %v397, %v398
          %v400 = vrot.slane %v399, 1
          %v401 = vadd.f32 %v399, %v400
          %v402 = vrot.slane %v395, 4
          %v403 = vadd.f32 %v395, %v402
          %v404 = vrot.slane %v403, 2
          %v405 = vadd.f32 %v403, %v404
          %v406 = vrot.slane %v405, 1
          %v407 = vadd.f32 %v405, %v406
          %v410 = vsel %vm390, %v407, %v401
          %412 = vst [vmem:[%s328] sm:$0x3] %v410
          %v413 = vld [vmem:[#allocation4] sm:$0xff]
          %v414 = vld [vmem:[#allocation4 + $0x8] sm:$0xff]
          %v415 = vrot.slane %v413, 4
          %v416 = vadd.f32 %v413, %v415
          %v417 = vrot.slane %v416, 2
          %v418 = vadd.f32 %v416, %v417
          %v419 = vrot.slane %v418, 1
          %v420 = vadd.f32 %v418, %v419
          %v421 = vrot.slane %v414, 4
          %v422 = vadd.f32 %v414, %v421
          %v423 = vrot.slane %v422, 2
          %v424 = vadd.f32 %v422, %v423
          %v425 = vrot.slane %v424, 1
          %v426 = vadd.f32 %v424, %v425
          %v429 = vsel %vm390, %v426, %v420
          %431 = vst [vmem:[%s332] sm:$0x3] %v429
        $region112: #{jaccard_loss.1} parent=95 // pred_fallthru
          _
        %p432 = scmp.lt.s32.totalorder %s20, 1
        %s433 = scalar_select %p432, %s20, 1
        %s434 = smul.addr %s433, 2
        %s435 = scalar_lea.vmem %s2, %s434
        %p436 = scmp.lt.s32.totalorder %s20, 1
        %s437 = scalar_select %p436, %s20, 1
        %s438 = smul.addr %s437, 2
        %s439 = scalar_lea.vmem %s3, %s438
        %p440 = scmp.lt.s32.totalorder %s20, 1
        %s441 = scalar_select %p440, %s20, 1
        %s442 = smul.addr %s441, 2
        %s443 = scalar_lea.vmem %s4, %s442
        // Predicated region
        $region113: #{jaccard_loss.1} parent=95 // pred_check
          %p444 = pneg %p102
        $region114: #{jaccard_loss.1} parent=95 // pred_check_branch
          %446 = sbr.rel (%p444) target = $region116
        $region115: #{jaccard_loss.1} parent=95 // pred_region
          _
        $region116: #{jaccard_loss.1} parent=95 // pred_fallthru
          _
        // Predicated region
        $region117: #{jaccard_loss.1} parent=95 // pred_check
          %p447 = pneg %p128
        $region118: #{jaccard_loss.1} parent=95 // pred_check_branch
          %449 = sbr.rel (%p447) target = $region120
        $region119: #{jaccard_loss.1} parent=95 // pred_region
          _
        $region120: #{jaccard_loss.1} parent=95 // pred_fallthru
          _
        // Predicated region
        $region121: #{jaccard_loss.1} parent=95 // pred_check
          %p450 = pneg %p154
        $region122: #{jaccard_loss.1} parent=95 // pred_check_branch
          %452 = sbr.rel (%p450) target = $region124
        $region123: #{jaccard_loss.1} parent=95 // pred_region
          _
        $region124: #{jaccard_loss.1} parent=95 // pred_fallthru
          _
      $region96: #{jaccard_loss.1} parent=5 // pred_fallthru
        _
      %p453 = scmp.le.s32.totalorder 2, %s11
      // Predicated region
      $region125: #{jaccard_loss.1} parent=5 // pred_check
        %p454 = pneg %p453
      $region126: #{jaccard_loss.1} parent=5 // pred_check_branch
        %456 = sbr.rel (%p454) target = $region128
      $region127: #{jaccard_loss.1} parent=5 // pred_region
        %s457 = ssub.s32 %s11, 2
        // Predicated region
        $region129: #{jaccard_loss.1} parent=127 // pred_check
          %p458 = pneg %p108
        $region130: #{jaccard_loss.1} parent=127 // pred_check_branch
          %460 = sbr.rel (%p458) target = $region132
        $region131: #{jaccard_loss.1} parent=127 // pred_region
          %p461 = scmp.lt.s32.totalorder %s22, 1
          %s462 = scalar_select %p461, %s22, 1
          %s463 = smul.addr %s462, 2
          %s464 = scalar_lea.vmem %s2, %s463
        $region132: #{jaccard_loss.1} parent=127 // pred_fallthru
          _
        // Predicated region
        $region133: #{jaccard_loss.1} parent=127 // pred_check
          %p465 = pneg %p134
        $region134: #{jaccard_loss.1} parent=127 // pred_check_branch
          %467 = sbr.rel (%p465) target = $region136
        $region135: #{jaccard_loss.1} parent=127 // pred_region
          %p468 = scmp.lt.s32.totalorder %s22, 1
          %s469 = scalar_select %p468, %s22, 1
          %s470 = smul.addr %s469, 2
          %s471 = scalar_lea.vmem %s3, %s470
        $region136: #{jaccard_loss.1} parent=127 // pred_fallthru
          _
        // Predicated region
        $region137: #{jaccard_loss.1} parent=127 // pred_check
          %p472 = pneg %p160
        $region138: #{jaccard_loss.1} parent=127 // pred_check_branch
          %474 = sbr.rel (%p472) target = $region140
        $region139: #{jaccard_loss.1} parent=127 // pred_region
          %p475 = scmp.lt.s32.totalorder %s22, 1
          %s476 = scalar_select %p475, %s22, 1
          %s477 = smul.addr %s476, 2
          %s478 = scalar_lea.vmem %s4, %s477
        $region140: #{jaccard_loss.1} parent=127 // pred_fallthru
          _
      $region128: #{jaccard_loss.1} parent=5 // pred_fallthru
        _
    $region6: #{jaccard_loss.1} parent=1 // loop_footer
      %s15 = sadd.s32 1, %s11
    $region7: #{jaccard_loss.1} parent=1 // loop_footer_branch
      %10 = sbr.rel target = $region3
    $region8: #{jaccard_loss.1} parent=1 // loop_exit
      _

</llo_original>
